<compile_context>
chip_gen: v7x
topology: tpu7x:2x2x1
jax: 0.10.0
libtpu: 0.0.40
codegen_flags: <defaults>
</compile_context>

<pallas_src>
import functools

import jax
import jax.numpy as jnp
from jax.experimental import pallas as pl
from jax.experimental.pallas import tpu as pltpu


LOG_STD_BOUND = (-10.0, 2.0)  # param_set['log_std_bound']


def sac_actor_kernel(obs_ref, w1_ref, b1_ref, w2_ref, b2_ref, w3_ref, b3_ref,
                     out_ref, *, n_action, log_std_min, log_std_max):
    # bf16 MXU operands, f32 accumulate.
    x = obs_ref[...].astype(jnp.bfloat16)
    h1 = jnp.tanh(
        jnp.dot(x, w1_ref[...], preferred_element_type=jnp.float32) + b1_ref[...]
    )
    h2 = jnp.tanh(
        jnp.dot(h1.astype(jnp.bfloat16), w2_ref[...],
                preferred_element_type=jnp.float32) + b2_ref[...]
    )
    # Single head matmul -> packed [mu | log_std] of width 2*n_action.
    y = (
        jnp.dot(h2.astype(jnp.bfloat16), w3_ref[...],
                preferred_element_type=jnp.float32) + b3_ref[...]
    )
    # Columns >= n_action are the log_std half: std = exp(clip(log_std)).
    col = jax.lax.broadcasted_iota(jnp.int32, y.shape, dimension=1)
    std_half = jnp.exp(jnp.clip(y, log_std_min, log_std_max))  # EUP exp, fused
    out = jnp.where(col >= n_action, std_half, y)
    out_ref[...] = out.astype(out_ref.dtype)


def _round_up(x, m):
    return ((x + m - 1) // m) * m


def _select_batch_tile(B, batch_tile):
    """Sublane-aligned batch tile; >=2 grid steps when B >= 16 (v7x megacore)."""
    tb = min(batch_tile, _round_up(B, 8))
    tb = max(8, (tb // 8) * 8)
    if B >= 16 and pl.cdiv(B, tb) < 2:
        tb = _round_up((B + 1) // 2, 8)
    return tb


def sac_actor_forward(obs, params, *, log_std_bound=LOG_STD_BOUND, batch_tile=256):
    """Equivalent of SAC_Actor.forward(obs): returns (mu, std) of TanhNormal."""
    B, in_len = obs.shape
    two_na = params["w3"].shape[1]
    n_action = two_na // 2

    tb = _select_batch_tile(B, batch_tile)
    B_pad = _round_up(B, tb)
    obs_in = obs if B_pad == B else jnp.pad(obs, ((0, B_pad - B), (0, 0)))
    grid = (B_pad // tb,)

    # If profiling at large B shows exposed input DMA, add
    # pipeline_mode=pl.Buffered(3) to obs_spec/out_spec (tiny VMEM cost).
    obs_spec = pl.BlockSpec((tb, in_len), lambda i: (i, 0))
    out_spec = pl.BlockSpec((tb, two_na), lambda i: (i, 0))

    def resident(arr):
        # Weights/biases: constant block index -> stay VMEM-resident across grid.
        return pl.BlockSpec(arr.shape, lambda i: (0, 0))

    kern = functools.partial(
        sac_actor_kernel,
        n_action=n_action,
        log_std_min=float(log_std_bound[0]),
        log_std_max=float(log_std_bound[1]),
    )

    packed = pl.pallas_call(
        kern,
        out_shape=jax.ShapeDtypeStruct((B_pad, two_na), jnp.float32),
        grid=grid,
        in_specs=[
            obs_spec,
            resident(params["w1"]), resident(params["b1"]),
            resident(params["w2"]), resident(params["b2"]),
            resident(params["w3"]), resident(params["b3"]),
        ],
        out_specs=out_spec,
        compiler_params=pltpu.CompilerParams(dimension_semantics=("parallel",)),
    )(
        obs_in,
        params["w1"], params["b1"],
        params["w2"], params["b2"],
        params["w3"], params["b3"],
    )

    mu = packed[:B, :n_action]
    std = packed[:B, n_action:]
    # TODO(synk): TanhNormal distribution object (rsample / log_prob with tanh
    # squash correction) has no Pallas equivalent; we return its (mu, std).
    return mu, std


def init_params(key, input_len, hidden_dim, n_action):
    """Deterministic synthetic init; shapes match the nn.Linear layers,
    stored [in, out] so the kernel computes x @ W + b. Head kept packed."""
    k1, k2, k3, k4, k5, k6 = jax.random.split(key, 6)
    scale = 0.1
    return {
        # matmul operands in bf16 (single-pass MXU), biases in f32
        "w1": (scale * jax.random.normal(k1, (input_len, hidden_dim),
                                         jnp.float32)).astype(jnp.bfloat16),
        "b1": scale * jax.random.normal(k2, (1, hidden_dim), jnp.float32),
        "w2": (scale * jax.random.normal(k3, (hidden_dim, hidden_dim),
                                         jnp.float32)).astype(jnp.bfloat16),
        "b2": scale * jax.random.normal(k4, (1, hidden_dim), jnp.float32),
        # packed head (fc3): [mu | log_std]
        "w3": (scale * jax.random.normal(k5, (hidden_dim, 2 * n_action),
                                         jnp.float32)).astype(jnp.bfloat16),
        "b3": scale * jax.random.normal(k6, (1, 2 * n_action), jnp.float32),
    }


def _reference(obs, params, n_action):
    """Plain-JAX reference with the same bf16-operand / f32-accumulate math."""
    x = obs.astype(jnp.bfloat16)
    h1 = jnp.tanh(
        jnp.dot(x, params["w1"], preferred_element_type=jnp.float32) + params["b1"]
    )
    h2 = jnp.tanh(
        jnp.dot(h1.astype(jnp.bfloat16), params["w2"],
                preferred_element_type=jnp.float32) + params["b2"]
    )
    y = (
        jnp.dot(h2.astype(jnp.bfloat16), params["w3"],
                preferred_element_type=jnp.float32) + params["b3"]
    )
    mu_ref = y[:, :n_action]
    ls_ref = jnp.clip(y[:, n_action:], LOG_STD_BOUND[0], LOG_STD_BOUND[1])
    return mu_ref, jnp.exp(ls_ref)


if __name__ == "__main__":
    # Small shapes consistent with the module:
    #   obs_shape = (12,), hidden_dim = 32, n_action = 4, continuous actions.
    obs_dim = 12
    hidden_dim = 32
    n_action = 4

    key = jax.random.PRNGKey(0)
    k_obs, k_par = jax.random.split(key, 2)
    params = init_params(k_par, obs_dim, hidden_dim, n_action)

    # Case 1: small aligned batch (single grid step).
    obs8 = jax.random.normal(k_obs, (8, obs_dim), jnp.float32)
    mu8, std8 = sac_actor_forward(obs8, params)
    jax.block_until_ready((mu8, std8))
    mu8_ref, std8_ref = _reference(obs8, params, n_action)
    assert mu8.shape == (8, n_action) and std8.shape == (8, n_action)
    assert jnp.allclose(mu8, mu8_ref, atol=1e-3, rtol=1e-3), "mu mismatch (B=8)"
    assert jnp.allclose(std8, std8_ref, atol=1e-3, rtol=1e-3), "std mismatch (B=8)"

    # Case 2: awkward batch size -> exercises padding + multi-step grid
    # (2 grid steps so both TCs are used on v7x).
    obs20 = jax.random.normal(jax.random.PRNGKey(1), (20, obs_dim), jnp.float32)
    mu20, std20 = sac_actor_forward(obs20, params)
    jax.block_until_ready((mu20, std20))
    mu20_ref, std20_ref = _reference(obs20, params, n_action)
    assert mu20.shape == (20, n_action) and std20.shape == (20, n_action)
    assert jnp.allclose(mu20, mu20_ref, atol=1e-3, rtol=1e-3), "mu mismatch (B=20)"
    assert jnp.allclose(std20, std20_ref, atol=1e-3, rtol=1e-3), "std mismatch (B=20)"

    print("KERNEL_OK")
</pallas_src>

<mosaic_0001>
module attributes {stable_mosaic.version = 11 : i64} {
  func.func @sac_actor_kernel(%arg0: i32, %arg1: memref<8x12xf32, #tpu.memory_space<vmem>>, %arg2: memref<12x32xbf16, #tpu.memory_space<vmem>>, %arg3: memref<1x32xf32, #tpu.memory_space<vmem>>, %arg4: memref<32x32xbf16, #tpu.memory_space<vmem>>, %arg5: memref<1x32xf32, #tpu.memory_space<vmem>>, %arg6: memref<32x8xbf16, #tpu.memory_space<vmem>>, %arg7: memref<1x8xf32, #tpu.memory_space<vmem>>, %arg8: memref<8x8xf32, #tpu.memory_space<vmem>>) attributes {dimension_semantics = [#tpu.dimension_semantics<parallel>], iteration_bounds = array<i64: 1>, scalar_prefetch = 0 : i64, scratch_operands = 0 : i64, tpu.core_type = #tpu.core_type<tc>, window_params = [{transform_indices = @transform_0, window_bounds = array<i64: 8, 12>}, {pipeline_mode = #tpu.pipeline_mode<synchronous>, transform_indices = @transform_1, window_bounds = array<i64: 12, 32>}, {pipeline_mode = #tpu.pipeline_mode<synchronous>, transform_indices = @transform_2, window_bounds = array<i64: 1, 32>}, {pipeline_mode = #tpu.pipeline_mode<synchronous>, transform_indices = @transform_3, window_bounds = array<i64: 32, 32>}, {pipeline_mode = #tpu.pipeline_mode<synchronous>, transform_indices = @transform_4, window_bounds = array<i64: 1, 32>}, {pipeline_mode = #tpu.pipeline_mode<synchronous>, transform_indices = @transform_5, window_bounds = array<i64: 32, 8>}, {pipeline_mode = #tpu.pipeline_mode<synchronous>, transform_indices = @transform_6, window_bounds = array<i64: 1, 8>}, {transform_indices = @transform_7, window_bounds = array<i64: 8, 8>}]} {
    %c0 = arith.constant 0 : index
    %c0_0 = arith.constant 0 : index
    %0 = vector.load %arg1[%c0, %c0_0] : memref<8x12xf32, #tpu.memory_space<vmem>>, vector<8x12xf32>
    %1 = arith.truncf %0 : vector<8x12xf32> to vector<8x12xbf16>
    %c0_1 = arith.constant 0 : index
    %c0_2 = arith.constant 0 : index
    %2 = vector.load %arg2[%c0_1, %c0_2] : memref<12x32xbf16, #tpu.memory_space<vmem>>, vector<12x32xbf16>
    %cst = arith.constant dense<0.000000e+00> : vector<8x32xf32>
    %3 = tpu.matmul %1, %2, %cst {dimension_numbers = #tpu.dot_dimension_numbers<[1], [0], [0], [1], [0, 0, 1, 1], [], []>} : vector<8x12xbf16>, vector<12x32xbf16>, vector<8x32xf32> -> vector<8x32xf32>
    %c0_3 = arith.constant 0 : index
    %c0_4 = arith.constant 0 : index
    %4 = vector.load %arg3[%c0_3, %c0_4] : memref<1x32xf32, #tpu.memory_space<vmem>>, vector<1x32xf32>
    %5 = vector.broadcast %4 : vector<1x32xf32> to vector<8x32xf32>
    %6 = arith.addf %3, %5 : vector<8x32xf32>
    %7 = math.tanh %6 : vector<8x32xf32>
    %8 = arith.truncf %7 : vector<8x32xf32> to vector<8x32xbf16>
    %c0_5 = arith.constant 0 : index
    %c0_6 = arith.constant 0 : index
    %9 = vector.load %arg4[%c0_5, %c0_6] : memref<32x32xbf16, #tpu.memory_space<vmem>>, vector<32x32xbf16>
    %cst_7 = arith.constant dense<0.000000e+00> : vector<8x32xf32>
    %10 = tpu.matmul %8, %9, %cst_7 {dimension_numbers = #tpu.dot_dimension_numbers<[1], [0], [0], [1], [0, 0, 1, 1], [], []>} : vector<8x32xbf16>, vector<32x32xbf16>, vector<8x32xf32> -> vector<8x32xf32>
    %c0_8 = arith.constant 0 : index
    %c0_9 = arith.constant 0 : index
    %11 = vector.load %arg5[%c0_8, %c0_9] : memref<1x32xf32, #tpu.memory_space<vmem>>, vector<1x32xf32>
    %12 = vector.broadcast %11 : vector<1x32xf32> to vector<8x32xf32>
    %13 = arith.addf %10, %12 : vector<8x32xf32>
    %14 = math.tanh %13 : vector<8x32xf32>
    %15 = arith.truncf %14 : vector<8x32xf32> to vector<8x32xbf16>
    %c0_10 = arith.constant 0 : index
    %c0_11 = arith.constant 0 : index
    %16 = vector.load %arg6[%c0_10, %c0_11] : memref<32x8xbf16, #tpu.memory_space<vmem>>, vector<32x8xbf16>
    %cst_12 = arith.constant dense<0.000000e+00> : vector<8x8xf32>
    %17 = tpu.matmul %15, %16, %cst_12 {dimension_numbers = #tpu.dot_dimension_numbers<[1], [0], [0], [1], [0, 0, 1, 1], [], []>} : vector<8x32xbf16>, vector<32x8xbf16>, vector<8x8xf32> -> vector<8x8xf32>
    %c0_13 = arith.constant 0 : index
    %c0_14 = arith.constant 0 : index
    %18 = vector.load %arg7[%c0_13, %c0_14] : memref<1x8xf32, #tpu.memory_space<vmem>>, vector<1x8xf32>
    %19 = vector.broadcast %18 : vector<1x8xf32> to vector<8x8xf32>
    %20 = arith.addf %17, %19 : vector<8x8xf32>
    %21 = tpu.iota {dimensions = array<i32: 1>} : vector<8x8xi32>
    %cst_15 = arith.constant -1.000000e+01 : f32
    %cst_16 = arith.constant 2.000000e+00 : f32
    %22 = vector.broadcast %cst_15 : f32 to vector<8x8xf32>
    %23 = arith.maximumf %22, %20 : vector<8x8xf32>
    %24 = vector.broadcast %cst_16 : f32 to vector<8x8xf32>
    %25 = arith.minimumf %24, %23 : vector<8x8xf32>
    %26 = math.exp %25 : vector<8x8xf32>
    %c4_i32 = arith.constant 4 : i32
    %27 = vector.broadcast %c4_i32 : i32 to vector<8x8xi32>
    %28 = arith.cmpi sge, %21, %27 : vector<8x8xi32>
    %29 = arith.select %28, %26, %20 : vector<8x8xi1>, vector<8x8xf32>
    %c0_17 = arith.constant 0 : index
    %c0_18 = arith.constant 0 : index
    %30 = vector.load %arg8[%c0_17, %c0_18] : memref<8x8xf32, #tpu.memory_space<vmem>>, vector<8x8xf32>
    tpu.vector_store %arg8[%c0_17, %c0_18], %29 {strides = array<i32>} : memref<8x8xf32, #tpu.memory_space<vmem>>, vector<8x8xf32>,
    return
  }
  func.func @transform_0(%arg0: i32) -> (i32, i32) {
    %c0_i32 = arith.constant 0 : i32
    %c0_i32_0 = arith.constant 0 : i32
    return %arg0, %c0_i32 : i32, i32
  }
  func.func @transform_1(%arg0: i32) -> (i32, i32) {
    %c0_i32 = arith.constant 0 : i32
    %c0_i32_0 = arith.constant 0 : i32
    %c0_i32_1 = arith.constant 0 : i32
    return %c0_i32, %c0_i32_0 : i32, i32
  }
  func.func @transform_2(%arg0: i32) -> (i32, i32) {
    %c0_i32 = arith.constant 0 : i32
    %c0_i32_0 = arith.constant 0 : i32
    %c0_i32_1 = arith.constant 0 : i32
    return %c0_i32, %c0_i32_0 : i32, i32
  }
  func.func @transform_3(%arg0: i32) -> (i32, i32) {
    %c0_i32 = arith.constant 0 : i32
    %c0_i32_0 = arith.constant 0 : i32
    %c0_i32_1 = arith.constant 0 : i32
    return %c0_i32, %c0_i32_0 : i32, i32
  }
  func.func @transform_4(%arg0: i32) -> (i32, i32) {
    %c0_i32 = arith.constant 0 : i32
    %c0_i32_0 = arith.constant 0 : i32
    %c0_i32_1 = arith.constant 0 : i32
    return %c0_i32, %c0_i32_0 : i32, i32
  }
  func.func @transform_5(%arg0: i32) -> (i32, i32) {
    %c0_i32 = arith.constant 0 : i32
    %c0_i32_0 = arith.constant 0 : i32
    %c0_i32_1 = arith.constant 0 : i32
    return %c0_i32, %c0_i32_0 : i32, i32
  }
  func.func @transform_6(%arg0: i32) -> (i32, i32) {
    %c0_i32 = arith.constant 0 : i32
    %c0_i32_0 = arith.constant 0 : i32
    %c0_i32_1 = arith.constant 0 : i32
    return %c0_i32, %c0_i32_0 : i32, i32
  }
  func.func @transform_7(%arg0: i32) -> (i32, i32) {
    %c0_i32 = arith.constant 0 : i32
    %c0_i32_0 = arith.constant 0 : i32
    return %arg0, %c0_i32 : i32, i32
  }
}

</mosaic_0001>

<llo_original>
// kernel: tpu_custom_call.1
$region0: #{tpu_custom_call.1}
  #allocation0 [shape = 'u32[]', space=smem, size = 0x4, offset = 0x4, fixed_abs, tag = 'smem constant byte address 0x4 - core index']
  #allocation1 [shape = 'u32[144,128]{1,0:T(1,128)}', space=vmem, size = 0x12000, scoped, tag = 'internal scratch']
  %s0 = inlined_call_operand.vmem [shape: f32[8,12], index: 0, kind: input, shape index: {}]
  %s1 = inlined_call_operand.hbm [shape: bf16[12,32], index: 1, kind: input, shape index: {}]
  %s2 = inlined_call_operand.vmem [shape: f32[1,32], index: 2, kind: input, shape index: {}]
  %s3 = inlined_call_operand.vmem [shape: bf16[32,32], index: 3, kind: input, shape index: {}]
  %s4 = inlined_call_operand.vmem [shape: f32[1,32], index: 4, kind: input, shape index: {}]
  %s5 = inlined_call_operand.vmem [shape: bf16[32,8], index: 5, kind: input, shape index: {}]
  %s6 = inlined_call_operand.vmem [shape: f32[1,8], index: 6, kind: input, shape index: {}]
  %s7 = inlined_call_operand.hbm [shape: f32[8,8], index: 7, kind: output, shape index: {}]
  %s8 = sld [smem:[#allocation0]]
  $region42: #{tpu_custom_call.1} parent=0
    _
  %s10 = ssub.s32 1, %s8
  %s11 = scalar_select 0, %s10, %s8
  $region1: #{tpu_custom_call.1} parent=0
    #allocation2 [shape = 'u8[4096]{0}', space=vmem, size = 0x1000, scoped, tag = 'input window, operand 1, single buffered']
    #allocation3 [shape = 's32[1]{0}', space=sflag, size = 0x4, scoped, tag = 'scoped memory for tpu_custom_call.1']
    #allocation4 [shape = 's32[1]{0}', space=sflag, size = 0x4, scoped, tag = 'scoped memory for tpu_custom_call.1']
    #allocation5 [shape = 'u8[4096]{0}', space=vmem, size = 0x1000, scoped, tag = 'output window, operand 0, single buffered']
    %12 = vsyncpa [#allocation3], 0
    %13 = vsyncpa [#allocation4], 0
    // Predicated region
    $region2: #{tpu_custom_call.1} parent=1 // pred_check
      _
    $region3: #{tpu_custom_call.1} parent=1 // pred_check_branch
      %15 = sbr.rel (0) target = $region5
    $region4: #{tpu_custom_call.1} parent=1 // pred_region
      _
    $region5: #{tpu_custom_call.1} parent=1 // pred_fallthru
      _
    // Predicated region
    $region6: #{tpu_custom_call.1} parent=1 // pred_check
      _
    $region7: #{tpu_custom_call.1} parent=1 // pred_check_branch
      %17 = sbr.rel (0) target = $region9
    $region8: #{tpu_custom_call.1} parent=1 // pred_region
      %s19 = ssub.s32 128, 128
      %20 = vsyncadd [#allocation3], %s19
      %s21 = sshll.u32 [#allocation2], 4
      %s22 = int_to_ptr.vmem [resolvable:$true] %s21
      %27 = dma.hbm_to_vmem [thread:$0]  %s1, 128, %s22, [#allocation3], 64, 64, 4
    $region9: #{tpu_custom_call.1} parent=1 // pred_fallthru
      _
    // Predicated region
    $region10: #{tpu_custom_call.1} parent=1 // pred_check
      _
    $region11: #{tpu_custom_call.1} parent=1 // pred_check_branch
      %29 = sbr.rel (0) target = $region13
    $region12: #{tpu_custom_call.1} parent=1 // pred_region
      _
    $region13: #{tpu_custom_call.1} parent=1 // pred_fallthru
      _
    // Predicated region
    $region14: #{tpu_custom_call.1} parent=1 // pred_check
      _
    $region15: #{tpu_custom_call.1} parent=1 // pred_check_branch
      %31 = sbr.rel (0) target = $region17
    $region16: #{tpu_custom_call.1} parent=1 // pred_region
      _
    $region17: #{tpu_custom_call.1} parent=1 // pred_fallthru
      _
    // Predicated region
    $region18: #{tpu_custom_call.1} parent=1 // pred_check
      _
    $region19: #{tpu_custom_call.1} parent=1 // pred_check_branch
      %33 = sbr.rel (0) target = $region21
    $region20: #{tpu_custom_call.1} parent=1 // pred_region
      _
    $region21: #{tpu_custom_call.1} parent=1 // pred_fallthru
      _
    // Predicated region
    $region22: #{tpu_custom_call.1} parent=1 // pred_check
      _
    $region23: #{tpu_custom_call.1} parent=1 // pred_check_branch
      %35 = sbr.rel (0) target = $region25
    $region24: #{tpu_custom_call.1} parent=1 // pred_region
      _
    $region25: #{tpu_custom_call.1} parent=1 // pred_fallthru
      _
    // Predicated region
    $region26: #{tpu_custom_call.1} parent=1 // pred_check
      _
    $region27: #{tpu_custom_call.1} parent=1 // pred_check_branch
      %37 = sbr.rel (0) target = $region29
    $region28: #{tpu_custom_call.1} parent=1 // pred_region
      _
    $region29: #{tpu_custom_call.1} parent=1 // pred_fallthru
      _
    // Predicated region
    $region30: #{tpu_custom_call.1} parent=1 // pred_check
      _
    $region31: #{tpu_custom_call.1} parent=1 // pred_check_branch
      %39 = sbr.rel (0) target = $region33
    $region32: #{tpu_custom_call.1} parent=1 // pred_region
      %40 = dma.done [#allocation3], 128
    $region33: #{tpu_custom_call.1} parent=1 // pred_fallthru
      _
    %v42 = vld [vmem:[%s0] sm:$0xff]
    %v43 = vpack.c.bf16 %v42, %v42
    %v44 = vld [vmem:[#allocation2] sm:$0xf]
    %v45 = vld [vmem:[#allocation2 + $0x4] sm:$0x3]
    %v46 = vld [vmem:[%s2] sm:$0x1]
    %v48 = vlaneseq
    %v49 = vshrl.u32 %v48, 7
    %v50 = vsub.s32 0, %v49
    %v51 = vrot.slane %v46, %v50
    %v55 = vunpack.c.l.b16 %v44
    %v56 = vunpack.c.l.b16 %v45
    %v57 = vpack.c.b16 %v56, %v55
    %vm58 = vcmask 97280
    %v60 = vsel %vm58, %v43, 0
    %vm62 = vcmask 1045504
    %v64 = vsel %vm62, %v57, 0
    %66 = vmatprep.subr.bf16.mxu0 0
    %67 = vmatpush1.bf16.msra.mxu0 %v64
    %68 = vmatprep.subr.bf16.mxu0 0
    %69 = vmatpush1.bf16.msra.mxu0 0
    %70 = vmatprep.subr.bf16.mxu0 0
    %71 = vmatpush1.bf16.msra.mxu0 0
    %72 = vmatprep.subr.bf16.mxu0 0
    %73 = vmatpush1.bf16.msra.mxu0 0
    %74 = vmatprep.subr.bf16.mxu0 0
    %75 = vmatpush1.bf16.msra.mxu0 0
    %76 = vmatprep.subr.bf16.mxu0 0
    %77 = vmatpush1.bf16.msra.mxu0 0
    %78 = vmatprep.subr.bf16.mxu0 0
    %79 = vmatpush1.bf16.msra.mxu0 0
    %80 = vmatprep.subr.bf16.mxu0 0
    %81 = vmatpush1.bf16.msra.mxu0 0
    %82 = vmatprep.subr.bf16.mxu0 0
    %83 = vmatpush1.bf16.msra.mxu0 0
    %84 = vmatprep.subr.bf16.mxu0 0
    %85 = vmatpush1.bf16.msra.mxu0 0
    %86 = vmatprep.subr.bf16.mxu0 0
    %87 = vmatpush1.bf16.msra.mxu0 0
    %88 = vmatprep.subr.bf16.mxu0 0
    %89 = vmatpush1.bf16.msra.mxu0 0
    %90 = vmatprep.subr.bf16.mxu0 0
    %91 = vmatpush1.bf16.msra.mxu0 0
    %92 = vmatprep.subr.bf16.mxu0 0
    %93 = vmatpush1.bf16.msra.mxu0 0
    %94 = vmatprep.subr.bf16.mxu0 0
    %95 = vmatpush1.bf16.msra.mxu0 0
    %96 = vmatprep.subr.bf16.mxu0 0
    %97 = vmatpush1.bf16.msra.mxu0 0
    %98 = vmatprep.mubr.bf16.mxu0 0
    %99 = vmatmul.mubr.bf16.gmra.mrb[0].mxu0 %v60
    %v100 = vpop.f32.mrb[0].mxu0
    %v101 = vadd.f32 %v51, %v100
    %v102 = vpop.f32.mrb[0].mxu0
    %v103 = vpop.f32.mrb[0].mxu0
    %v104 = vpop.f32.mrb[0].mxu0
    %105 = vdwg.mxu0
    %v106 = vtanh.pop %v101
    %v107 = vpack.c.bf16 %v106, %v106
    %v108 = vld [vmem:[%s3] sm:$0xf]
    %v109 = vld [vmem:[%s3 + $0x4] sm:$0xf]
    %v110 = vld [vmem:[%s3 + $0x8] sm:$0xf]
    %v111 = vld [vmem:[%s3 + $0xc] sm:$0xf]
    %v112 = vld [vmem:[%s4] sm:$0x1]
    %v114 = vlaneseq
    %v115 = vshrl.u32 %v114, 7
    %v116 = vsub.s32 0, %v115
    %v117 = vrot.slane %v112, %v116
    %v123 = vunpack.c.l.b16 %v108
    %v124 = vunpack.c.l.b16 %v109
    %v125 = vunpack.c.l.b16 %v110
    %v126 = vunpack.c.l.b16 %v111
    %v127 = vpack.c.b16 %v124, %v123
    %v128 = vpack.c.b16 %v126, %v125
    %vm131 = vcmask 261120
    %v133 = vsel %vm131, %v107, 0
    %135 = vmatprep.subr.bf16.mxu0 0
    %136 = vmatpush1.bf16.msra.mxu0 %v127
    %137 = vmatprep.subr.bf16.mxu0 0
    %138 = vmatpush1.bf16.msra.mxu0 %v128
    %139 = vmatprep.subr.bf16.mxu0 0
    %140 = vmatpush1.bf16.msra.mxu0 0
    %141 = vmatprep.subr.bf16.mxu0 0
    %142 = vmatpush1.bf16.msra.mxu0 0
    %143 = vmatprep.subr.bf16.mxu0 0
    %144 = vmatpush1.bf16.msra.mxu0 0
    %145 = vmatprep.subr.bf16.mxu0 0
    %146 = vmatpush1.bf16.msra.mxu0 0
    %147 = vmatprep.subr.bf16.mxu0 0
    %148 = vmatpush1.bf16.msra.mxu0 0
    %149 = vmatprep.subr.bf16.mxu0 0
    %150 = vmatpush1.bf16.msra.mxu0 0
    %151 = vmatprep.subr.bf16.mxu0 0
    %152 = vmatpush1.bf16.msra.mxu0 0
    %153 = vmatprep.subr.bf16.mxu0 0
    %154 = vmatpush1.bf16.msra.mxu0 0
    %155 = vmatprep.subr.bf16.mxu0 0
    %156 = vmatpush1.bf16.msra.mxu0 0
    %157 = vmatprep.subr.bf16.mxu0 0
    %158 = vmatpush1.bf16.msra.mxu0 0
    %159 = vmatprep.subr.bf16.mxu0 0
    %160 = vmatpush1.bf16.msra.mxu0 0
    %161 = vmatprep.subr.bf16.mxu0 0
    %162 = vmatpush1.bf16.msra.mxu0 0
    %163 = vmatprep.subr.bf16.mxu0 0
    %164 = vmatpush1.bf16.msra.mxu0 0
    %165 = vmatprep.subr.bf16.mxu0 0
    %166 = vmatpush1.bf16.msra.mxu0 0
    %167 = vmatprep.mubr.bf16.mxu0 0
    %168 = vmatmul.mubr.bf16.gmra.mrb[0].mxu0 %v133
    %v169 = vpop.f32.mrb[0].mxu0
    %v170 = vadd.f32 %v117, %v169
    %v171 = vpop.f32.mrb[0].mxu0
    %v172 = vpop.f32.mrb[0].mxu0
    %v173 = vpop.f32.mrb[0].mxu0
    %174 = vdwg.mxu0
    %v175 = vtanh.pop %v170
    %v176 = vpack.c.bf16 %v175, %v175
    %v177 = vld [vmem:[%s5] sm:$0xf]
    %v178 = vld [vmem:[%s5 + $0x4] sm:$0xf]
    %v179 = vld [vmem:[%s5 + $0x8] sm:$0xf]
    %v180 = vld [vmem:[%s5 + $0xc] sm:$0xf]
    %v181 = vld [vmem:[%s6] sm:$0x1]
    %v183 = vlaneseq
    %v184 = vshrl.u32 %v183, 7
    %v185 = vsub.s32 0, %v184
    %v186 = vrot.slane %v181, %v185
    %v192 = vunpack.c.l.b16 %v177
    %v193 = vunpack.c.l.b16 %v178
    %v194 = vunpack.c.l.b16 %v179
    %v195 = vunpack.c.l.b16 %v180
    %v196 = vpack.c.b16 %v193, %v192
    %v197 = vpack.c.b16 %v195, %v194
    %v201 = vsel %vm131, %v176, 0
    %203 = vmatprep.subr.bf16.mxu0 0
    %204 = vmatpush1.bf16.msra.mxu0 %v196
    %205 = vmatprep.subr.bf16.mxu0 0
    %206 = vmatpush1.bf16.msra.mxu0 %v197
    %207 = vmatprep.subr.bf16.mxu0 0
    %208 = vmatpush1.bf16.msra.mxu0 0
    %209 = vmatprep.subr.bf16.mxu0 0
    %210 = vmatpush1.bf16.msra.mxu0 0
    %211 = vmatprep.subr.bf16.mxu0 0
    %212 = vmatpush1.bf16.msra.mxu0 0
    %213 = vmatprep.subr.bf16.mxu0 0
    %214 = vmatpush1.bf16.msra.mxu0 0
    %215 = vmatprep.subr.bf16.mxu0 0
    %216 = vmatpush1.bf16.msra.mxu0 0
    %217 = vmatprep.subr.bf16.mxu0 0
    %218 = vmatpush1.bf16.msra.mxu0 0
    %219 = vmatprep.subr.bf16.mxu0 0
    %220 = vmatpush1.bf16.msra.mxu0 0
    %221 = vmatprep.subr.bf16.mxu0 0
    %222 = vmatpush1.bf16.msra.mxu0 0
    %223 = vmatprep.subr.bf16.mxu0 0
    %224 = vmatpush1.bf16.msra.mxu0 0
    %225 = vmatprep.subr.bf16.mxu0 0
    %226 = vmatpush1.bf16.msra.mxu0 0
    %227 = vmatprep.subr.bf16.mxu0 0
    %228 = vmatpush1.bf16.msra.mxu0 0
    %229 = vmatprep.subr.bf16.mxu0 0
    %230 = vmatpush1.bf16.msra.mxu0 0
    %231 = vmatprep.subr.bf16.mxu0 0
    %232 = vmatpush1.bf16.msra.mxu0 0
    %233 = vmatprep.subr.bf16.mxu0 0
    %234 = vmatpush1.bf16.msra.mxu0 0
    %235 = vmatprep.mubr.bf16.mxu0 0
    %236 = vmatmul.mubr.bf16.gmra.mrb[0].mxu0 %v201
    %v237 = vpop.f32.mrb[0].mxu0
    %v238 = vadd.f32 %v186, %v237
    %v239 = vpop.f32.mrb[0].mxu0
    %v240 = vpop.f32.mrb[0].mxu0
    %v241 = vpop.f32.mrb[0].mxu0
    %242 = vdwg.mxu0
    %v243 = vlaneseq
    %v244 = vand.u32 %v243, 127
    %v245 = vmax.f32 %v238, -10.0
    %v246 = vmin.f32 %v245, 2.0
    %v247 = vmul.f32 %v246, 1.442695
    %v248 = vpow.pop %v247
    %vm249 = vcmp.ge.s32.totalorder %v244, 4
    %v250 = vsel %vm249, %v248, %v238
    %vm251 = vcmask 64512
    %252 = vst.msk [vmem:[#allocation5] sm:$0xff] %vm251, %v250
    // Predicated region
    $region34: #{tpu_custom_call.1} parent=1 // pred_check
      _
    $region35: #{tpu_custom_call.1} parent=1 // pred_check_branch
      %254 = sbr.rel (0) target = $region37
    $region36: #{tpu_custom_call.1} parent=1 // pred_region
      %s256 = ssub.s32 128, 128
      %257 = vsyncadd [#allocation4], %s256
      %s259 = sshll.u32 [#allocation5], 4
      %s260 = int_to_ptr.vmem [resolvable:$true] %s259
      %262 = dma.vmem_to_hbm [thread:$0]  %s260, 128, %s7, [#allocation4]
    $region37: #{tpu_custom_call.1} parent=1 // pred_fallthru
      _
    // Predicated region
    $region38: #{tpu_custom_call.1} parent=1 // pred_check
      _
    $region39: #{tpu_custom_call.1} parent=1 // pred_check_branch
      %264 = sbr.rel (0) target = $region41
    $region40: #{tpu_custom_call.1} parent=1 // pred_region
      %265 = dma.done [#allocation4], 128
    $region41: #{tpu_custom_call.1} parent=1 // pred_fallthru
      _
    %266 = vsyncpa [#allocation3], 1
    %267 = vsyncpa [#allocation4], 1

</llo_original>
